<compile_context>
chip_gen: v5e
topology: v5e:2x2
jax: 0.10.0
libtpu: 0.0.40
codegen_flags: <defaults>
</compile_context>

<pallas_src>
import jax
import jax.numpy as jnp
from jax.experimental import pallas as pl
from jax.experimental.pallas import tpu as pltpu

# Explicit scoped-VMEM budget: < v7x's 64 MiB physical VMEM, and well above
# v5e's 16 MiB / v6e-v7x's 32 MiB default scoped limits so large tiles fit.
_VMEM_BUDGET_BYTES = 48 * 1024 * 1024


def time_embedding_kernel(x_ref, w1_ref, b1_ref, w2_ref, b2_ref, o_ref):
    """One grid step computes a (B, TN) column tile of the output.

    The first matmul + SiLU is recomputed every tile (negligible FLOPs, hidden
    entirely under the w2 DMA) so the grid axis carries no cross-iteration
    state and can be sharded across TensorCores ("parallel").
    """
    # ---- Linear 1: (B, n_embed) @ (n_embed, 4n) + b1, bf16 MXU / f32 acc ----
    x_bf16 = x_ref[...].astype(jnp.bfloat16)          # intentional bf16 MXU LHS
    h = jnp.dot(x_bf16, w1_ref[...], preferred_element_type=jnp.float32)
    h = h + b1_ref[...]
    # SiLU in f32: x * sigmoid(x)  (sigmoid goes to the EUP slot)
    h = h * jax.nn.sigmoid(h)

    # ---- Linear 2 over this output-column tile -----------------------------
    # Explicit activation cast to bf16 (documented choice): bf16 x bf16 -> f32.
    h_bf16 = h.astype(jnp.bfloat16)
    out = jnp.dot(h_bf16, w2_ref[...], preferred_element_type=jnp.float32)
    out = out + b2_ref[...]
    o_ref[...] = out.astype(o_ref.dtype)


def _tile_vmem_bytes(n_hidden: int, n_embed: int, batch: int, tn: int) -> int:
    """Rough per-pallas_call VMEM footprint for column tile width `tn`.

    Every BlockSpec input/output is double-buffered (x2), even the
    constant-index ones; add a small slab for f32 compute intermediates.
    """
    w2 = 2 * n_hidden * tn * 2          # bf16, double-buffered (dominant term)
    b2 = 2 * tn * 4
    out = 2 * batch * tn * 4
    w1 = 2 * n_embed * n_hidden * 2     # bf16, constant index (fetched once)
    x = 2 * batch * n_embed * 4
    b1 = 2 * n_hidden * 4
    scratch = 2 * batch * max(n_hidden, tn) * 4   # f32 h / out intermediates
    return w2 + b2 + out + w1 + x + b1 + scratch


def _pick_tile(n_hidden: int, n_embed: int, batch: int) -> int:
    """Choose the output-column tile width.

    Preference order (all lane-dense, i.e. multiples of 128, and exact
    divisors of n_hidden so the grid has no remainder):
      1. tn = n_hidden // 2  -> grid of exactly 2 balanced tiles, one per
         TensorCore on v7x, and only 2 x ~0.35us step overhead elsewhere.
      2. Otherwise the largest tile that fits the VMEM budget (often the full
         width -> single grid step).
    """
    candidates = [tn for tn in range(128, n_hidden + 1, 128) if n_hidden % tn == 0]
    if not candidates:
        # Tiny / odd hidden sizes: single full-width tile.
        return n_hidden

    def fits(tn: int) -> bool:
        return _tile_vmem_bytes(n_hidden, n_embed, batch, tn) <= _VMEM_BUDGET_BYTES

    half = n_hidden // 2
    if half in candidates and fits(half):
        return half
    for tn in sorted(candidates, reverse=True):
        if fits(tn):
            return tn
    return candidates[0]


def time_embedding(x, w1, b1, w2, b2):
    """TimeEmbedding forward.

    x : (B, n_embed)         float32
    w1: (n_embed, n_hidden)  bfloat16  (pre-transposed vs nn.Linear)
    b1: (1, n_hidden)        float32
    w2: (n_hidden, n_hidden) bfloat16  (pre-transposed vs nn.Linear)
    b2: (1, n_hidden)        float32
    returns (B, n_hidden) float32
    """
    B, n_embed = x.shape
    n_hidden = w1.shape[1]
    assert w1.shape == (n_embed, n_hidden)
    assert w2.shape == (n_hidden, n_hidden)
    assert b1.shape == (1, n_hidden) and b2.shape == (1, n_hidden)

    tn = _pick_tile(n_hidden, n_embed, B)
    n_tiles = n_hidden // tn
    grid = (n_tiles,)

    # Tiny-FLOP, weight-byte-heavy: help XLA schedule/overlap it correctly.
    # Includes the per-tile recompute of linear1 + SiLU; x/w1/b1 are fetched
    # once (constant index_map), w2/b2 streamed once.
    cost = pl.CostEstimate(
        flops=(n_tiles * 2 * B * n_embed * n_hidden
               + 2 * B * n_hidden * n_hidden),
        transcendentals=n_tiles * B * n_hidden,
        bytes_accessed=(x.size * x.dtype.itemsize
                        + w1.size * w1.dtype.itemsize
                        + b1.size * b1.dtype.itemsize
                        + w2.size * w2.dtype.itemsize
                        + b2.size * b2.dtype.itemsize
                        + B * n_hidden * 4),
    )

    return pl.pallas_call(
        time_embedding_kernel,
        out_shape=jax.ShapeDtypeStruct((B, n_hidden), jnp.float32),
        grid_spec=pltpu.PrefetchScalarGridSpec(
            num_scalar_prefetch=0,
            grid=grid,
            in_specs=[
                # Small, grid-invariant operands: constant block index, so they
                # are DMA'd once and not re-fetched across grid steps.
                pl.BlockSpec((B, n_embed), lambda j: (0, 0)),
                pl.BlockSpec((n_embed, n_hidden), lambda j: (0, 0)),
                pl.BlockSpec((1, n_hidden), lambda j: (0, 0)),
                # w2 / b2 streamed per output-column tile: DMA of tile j+1
                # overlaps the matmul of tile j (default double buffering is
                # enough; deeper buffering would only burn VMEM).
                pl.BlockSpec((n_hidden, tn), lambda j: (0, j)),
                pl.BlockSpec((1, tn), lambda j: (0, j)),
            ],
            out_specs=pl.BlockSpec((B, tn), lambda j: (0, j)),
        ),
        compiler_params=pltpu.CompilerParams(
            # Independent output tiles -> shard the w2 stream across the two
            # TensorCores on v7x; no-op on single-TC v5e/v6e.
            dimension_semantics=("parallel",),
            # Explicit budget: lets the enlarged tile through on v5e (16 MiB
            # default scoped limit) while staying under v7x's 64 MiB physical.
            vmem_limit_bytes=_VMEM_BUDGET_BYTES,
        ),
        cost_estimate=cost,
    )(x, w1, b1, w2, b2)


def reference(x, w1_bf16, b1, w2_bf16, b2):
    """Numerics-mirrored reference (same bf16 casts, f32 accumulation)."""
    xb = x.astype(jnp.bfloat16).astype(jnp.float32)
    w1 = w1_bf16.astype(jnp.float32)
    w2 = w2_bf16.astype(jnp.float32)
    h = jnp.dot(xb, w1, precision=jax.lax.Precision.HIGHEST) + b1
    h = h * jax.nn.sigmoid(h)
    hb = h.astype(jnp.bfloat16).astype(jnp.float32)
    return jnp.dot(hb, w2, precision=jax.lax.Precision.HIGHEST) + b2


if __name__ == "__main__":
    B = 2
    n_embed = 32
    n_hidden = 4 * n_embed  # 128

    key = jax.random.PRNGKey(0)
    kx, k1, kb1, k2, kb2 = jax.random.split(key, 5)

    x = jax.random.normal(kx, (B, n_embed), dtype=jnp.float32)
    # nn.Linear params (stored transposed); weights in bf16 (HBM-BW win),
    # biases kept in f32 (negligible bytes).
    w1 = (jax.random.normal(k1, (n_embed, n_hidden), dtype=jnp.float32) * 0.02
          ).astype(jnp.bfloat16)
    b1 = jax.random.normal(kb1, (1, n_hidden), dtype=jnp.float32) * 0.02
    w2 = (jax.random.normal(k2, (n_hidden, n_hidden), dtype=jnp.float32) * 0.02
          ).astype(jnp.bfloat16)
    b2 = jax.random.normal(kb2, (1, n_hidden), dtype=jnp.float32) * 0.02

    out = time_embedding(x, w1, b1, w2, b2)
    out = jax.block_until_ready(out)

    ref = reference(x, w1, b1, w2, b2)
    assert out.shape == (B, n_hidden), out.shape
    err = float(jnp.max(jnp.abs(out - ref)))
    # MXU bf16 accumulation order differs from the HIGHEST-precision XLA
    # reference; error grows with K, so keep the tolerance comfortably loose.
    assert jnp.allclose(out, ref, atol=2e-3, rtol=2e-2), (
        f"mismatch, max err {err}")

    print("KERNEL_OK")
</pallas_src>

<mosaic_0001>
module attributes {stable_mosaic.version = 11 : i64} {
  func.func @time_embedding_kernel(%arg0: i32, %arg1: memref<2x32xf32, #tpu.memory_space<vmem>>, %arg2: memref<32x128xbf16, #tpu.memory_space<vmem>>, %arg3: memref<1x128xf32, #tpu.memory_space<vmem>>, %arg4: memref<128x128xbf16, #tpu.memory_space<vmem>>, %arg5: memref<1x128xf32, #tpu.memory_space<vmem>>, %arg6: memref<2x128xf32, #tpu.memory_space<vmem>>) attributes {dimension_semantics = [#tpu.dimension_semantics<parallel>], iteration_bounds = array<i64: 1>, scalar_prefetch = 0 : i64, scratch_operands = 0 : i64, tpu.core_type = #tpu.core_type<tc>, window_params = [{pipeline_mode = #tpu.pipeline_mode<synchronous>, transform_indices = @transform_0, window_bounds = array<i64: 2, 32>}, {pipeline_mode = #tpu.pipeline_mode<synchronous>, transform_indices = @transform_1, window_bounds = array<i64: 32, 128>}, {pipeline_mode = #tpu.pipeline_mode<synchronous>, transform_indices = @transform_2, window_bounds = array<i64: 1, 128>}, {transform_indices = @transform_3, window_bounds = array<i64: 128, 128>}, {transform_indices = @transform_4, window_bounds = array<i64: 1, 128>}, {transform_indices = @transform_5, window_bounds = array<i64: 2, 128>}]} {
    %c0 = arith.constant 0 : index
    %c0_0 = arith.constant 0 : index
    %0 = vector.load %arg1[%c0, %c0_0] : memref<2x32xf32, #tpu.memory_space<vmem>>, vector<2x32xf32>
    %1 = arith.truncf %0 : vector<2x32xf32> to vector<2x32xbf16>
    %c0_1 = arith.constant 0 : index
    %c0_2 = arith.constant 0 : index
    %2 = vector.load %arg2[%c0_1, %c0_2] : memref<32x128xbf16, #tpu.memory_space<vmem>>, vector<32x128xbf16>
    %cst = arith.constant dense<0.000000e+00> : vector<2x128xf32>
    %3 = tpu.matmul %1, %2, %cst {dimension_numbers = #tpu.dot_dimension_numbers<[1], [0], [0], [1], [0, 0, 1, 1], [], []>} : vector<2x32xbf16>, vector<32x128xbf16>, vector<2x128xf32> -> vector<2x128xf32>
    %c0_3 = arith.constant 0 : index
    %c0_4 = arith.constant 0 : index
    %4 = vector.load %arg3[%c0_3, %c0_4] : memref<1x128xf32, #tpu.memory_space<vmem>>, vector<1x128xf32>
    %5 = vector.broadcast %4 : vector<1x128xf32> to vector<2x128xf32>
    %6 = arith.addf %3, %5 : vector<2x128xf32>
    %7 = arith.negf %6 : vector<2x128xf32>
    %8 = math.exp %7 : vector<2x128xf32>
    %cst_5 = arith.constant 1.000000e+00 : f32
    %9 = vector.broadcast %cst_5 : f32 to vector<2x128xf32>
    %10 = arith.addf %9, %8 : vector<2x128xf32>
    %11 = arith.divf %9, %10 : vector<2x128xf32>
    %12 = arith.mulf %6, %11 : vector<2x128xf32>
    %13 = arith.truncf %12 : vector<2x128xf32> to vector<2x128xbf16>
    %c0_6 = arith.constant 0 : index
    %c0_7 = arith.constant 0 : index
    %14 = vector.load %arg4[%c0_6, %c0_7] : memref<128x128xbf16, #tpu.memory_space<vmem>>, vector<128x128xbf16>
    %cst_8 = arith.constant dense<0.000000e+00> : vector<2x128xf32>
    %15 = tpu.matmul %13, %14, %cst_8 {dimension_numbers = #tpu.dot_dimension_numbers<[1], [0], [0], [1], [0, 0, 1, 1], [], []>} : vector<2x128xbf16>, vector<128x128xbf16>, vector<2x128xf32> -> vector<2x128xf32>
    %c0_9 = arith.constant 0 : index
    %c0_10 = arith.constant 0 : index
    %16 = vector.load %arg5[%c0_9, %c0_10] : memref<1x128xf32, #tpu.memory_space<vmem>>, vector<1x128xf32>
    %17 = vector.broadcast %16 : vector<1x128xf32> to vector<2x128xf32>
    %18 = arith.addf %15, %17 : vector<2x128xf32>
    %c0_11 = arith.constant 0 : index
    %c0_12 = arith.constant 0 : index
    %19 = vector.load %arg6[%c0_11, %c0_12] : memref<2x128xf32, #tpu.memory_space<vmem>>, vector<2x128xf32>
    tpu.vector_store %arg6[%c0_11, %c0_12], %18 {strides = array<i32>} : memref<2x128xf32, #tpu.memory_space<vmem>>, vector<2x128xf32>,
    return
  }
  func.func @transform_0(%arg0: i32) -> (i32, i32) {
    %c0_i32 = arith.constant 0 : i32
    %c0_i32_0 = arith.constant 0 : i32
    %c0_i32_1 = arith.constant 0 : i32
    return %c0_i32, %c0_i32_0 : i32, i32
  }
  func.func @transform_1(%arg0: i32) -> (i32, i32) {
    %c0_i32 = arith.constant 0 : i32
    %c0_i32_0 = arith.constant 0 : i32
    %c0_i32_1 = arith.constant 0 : i32
    return %c0_i32, %c0_i32_0 : i32, i32
  }
  func.func @transform_2(%arg0: i32) -> (i32, i32) {
    %c0_i32 = arith.constant 0 : i32
    %c0_i32_0 = arith.constant 0 : i32
    %c0_i32_1 = arith.constant 0 : i32
    return %c0_i32, %c0_i32_0 : i32, i32
  }
  func.func @transform_3(%arg0: i32) -> (i32, i32) {
    %c0_i32 = arith.constant 0 : i32
    %c0_i32_0 = arith.constant 0 : i32
    return %c0_i32, %arg0 : i32, i32
  }
  func.func @transform_4(%arg0: i32) -> (i32, i32) {
    %c0_i32 = arith.constant 0 : i32
    %c0_i32_0 = arith.constant 0 : i32
    return %c0_i32, %arg0 : i32, i32
  }
  func.func @transform_5(%arg0: i32) -> (i32, i32) {
    %c0_i32 = arith.constant 0 : i32
    %c0_i32_0 = arith.constant 0 : i32
    return %c0_i32, %arg0 : i32, i32
  }
}

</mosaic_0001>

<llo_original>
// kernel: tpu_custom_call.1
$region0: #{tpu_custom_call.1}
  #allocation0 [shape = 'u32[]', space=smem, size = 0x4, offset = 0x4, fixed_abs, tag = 'smem constant byte address 0x4 - core index']
  #allocation1 [shape = 'u32[72,128]{1,0:T(1,128)}', space=vmem, size = 0x9000, scoped, tag = 'internal scratch']
  %s0 = inlined_call_operand.hbm [shape: f32[2,32], index: 0, kind: input, shape index: {}]
  %s1 = inlined_call_operand.hbm [shape: bf16[32,128], index: 1, kind: input, shape index: {}]
  %s2 = inlined_call_operand.vmem [shape: f32[1,128], index: 2, kind: input, shape index: {}]
  %s3 = inlined_call_operand.hbm [shape: bf16[128,128], index: 3, kind: input, shape index: {}]
  %s4 = inlined_call_operand.vmem [shape: f32[1,128], index: 4, kind: input, shape index: {}]
  %s5 = inlined_call_operand.hbm [shape: f32[2,128], index: 5, kind: output, shape index: {}]
  %s6 = sld [smem:[#allocation0]]
  $region42: #{tpu_custom_call.1} parent=0
    _
  %s8 = ssub.s32 1, %s6
  %s9 = scalar_select 0, %s8, %s6
  $region1: #{tpu_custom_call.1} parent=0
    #allocation2 [shape = 'u8[1024]{0}', space=vmem, size = 0x400, scoped, tag = 'input window, operand 0, single buffered']
    #allocation3 [shape = 's32[1]{0}', space=sflag, size = 0x4, scoped, tag = 'scoped memory for tpu_custom_call.1']
    #allocation4 [shape = 's32[1]{0}', space=sflag, size = 0x4, scoped, tag = 'scoped memory for tpu_custom_call.1']
    #allocation5 [shape = 'u8[8192]{0}', space=vmem, size = 0x2000, scoped, tag = 'input window, operand 1, single buffered']
    #allocation6 [shape = 's32[1]{0}', space=sflag, size = 0x4, scoped, tag = 'scoped memory for tpu_custom_call.1']
    #allocation7 [shape = 'u8[32768]{0}', space=vmem, size = 0x8000, scoped, tag = 'input window, operand 3, single buffered']
    #allocation8 [shape = 'u8[1024]{0}', space=vmem, size = 0x400, scoped, tag = 'output window, operand 0, single buffered']
    %10 = vsyncpa [#allocation3], 0
    %11 = vsyncpa [#allocation6], 0
    %12 = vsyncpa [#allocation4], 0
    // Predicated region
    $region2: #{tpu_custom_call.1} parent=1 // pred_check
      _
    $region3: #{tpu_custom_call.1} parent=1 // pred_check_branch
      %14 = sbr.rel (0) target = $region5
    $region4: #{tpu_custom_call.1} parent=1 // pred_region
      %16 = vsyncadd [#allocation3], 0
      %s18 = sshll.u32 %s0, 4
      %s19 = int_to_ptr.hbm [resolvable:$true] %s18
      %s20 = sshll.u32 [#allocation2], 4
      %s21 = int_to_ptr.vmem [resolvable:$true] %s20
      %23 = dma.hbm_to_vmem [thread:$0]  %s19, 32, %s21, [#allocation3]
    $region5: #{tpu_custom_call.1} parent=1 // pred_fallthru
      _
    // Predicated region
    $region6: #{tpu_custom_call.1} parent=1 // pred_check
      _
    $region7: #{tpu_custom_call.1} parent=1 // pred_check_branch
      %25 = sbr.rel (0) target = $region9
    $region8: #{tpu_custom_call.1} parent=1 // pred_region
      %27 = vsyncadd [#allocation6], 0
      %s28 = sshll.u32 %s1, 4
      %s29 = int_to_ptr.hbm [resolvable:$true] %s28
      %s30 = sshll.u32 [#allocation5], 4
      %s31 = int_to_ptr.vmem [resolvable:$true] %s30
      %36 = dma.hbm_to_vmem [thread:$0]  %s29, 256, %s31, [#allocation6], 64, 64, 4
    $region9: #{tpu_custom_call.1} parent=1 // pred_fallthru
      _
    // Predicated region
    $region10: #{tpu_custom_call.1} parent=1 // pred_check
      _
    $region11: #{tpu_custom_call.1} parent=1 // pred_check_branch
      %38 = sbr.rel (0) target = $region13
    $region12: #{tpu_custom_call.1} parent=1 // pred_region
      _
    $region13: #{tpu_custom_call.1} parent=1 // pred_fallthru
      _
    // Predicated region
    $region14: #{tpu_custom_call.1} parent=1 // pred_check
      _
    $region15: #{tpu_custom_call.1} parent=1 // pred_check_branch
      %40 = sbr.rel (0) target = $region17
    $region16: #{tpu_custom_call.1} parent=1 // pred_region
      %42 = vsyncadd [#allocation6], 0
      %s43 = sshll.u32 %s3, 4
      %s44 = int_to_ptr.hbm [resolvable:$true] %s43
      %s45 = sshll.u32 [#allocation7], 4
      %s46 = int_to_ptr.vmem [resolvable:$true] %s45
      %51 = dma.hbm_to_vmem [thread:$0]  %s44, 1024, %s46, [#allocation6], 64, 64, 4
    $region17: #{tpu_custom_call.1} parent=1 // pred_fallthru
      _
    // Predicated region
    $region18: #{tpu_custom_call.1} parent=1 // pred_check
      _
    $region19: #{tpu_custom_call.1} parent=1 // pred_check_branch
      %53 = sbr.rel (0) target = $region21
    $region20: #{tpu_custom_call.1} parent=1 // pred_region
      _
    $region21: #{tpu_custom_call.1} parent=1 // pred_fallthru
      _
    // Predicated region
    $region22: #{tpu_custom_call.1} parent=1 // pred_check
      _
    $region23: #{tpu_custom_call.1} parent=1 // pred_check_branch
      %55 = sbr.rel (0) target = $region25
    $region24: #{tpu_custom_call.1} parent=1 // pred_region
      %57 = dma.done [#allocation3], 32
    $region25: #{tpu_custom_call.1} parent=1 // pred_fallthru
      _
    // Predicated region
    $region26: #{tpu_custom_call.1} parent=1 // pred_check
      _
    $region27: #{tpu_custom_call.1} parent=1 // pred_check_branch
      %59 = sbr.rel (0) target = $region29
    $region28: #{tpu_custom_call.1} parent=1 // pred_region
      %61 = dma.done [#allocation6], 256
    $region29: #{tpu_custom_call.1} parent=1 // pred_fallthru
      _
    // Predicated region
    $region30: #{tpu_custom_call.1} parent=1 // pred_check
      _
    $region31: #{tpu_custom_call.1} parent=1 // pred_check_branch
      %63 = sbr.rel (0) target = $region33
    $region32: #{tpu_custom_call.1} parent=1 // pred_region
      %65 = dma.done [#allocation6], 1024
    $region33: #{tpu_custom_call.1} parent=1 // pred_fallthru
      _
    %v67 = vld [vmem:[#allocation2] sm:$0x3]
    %v68 = vpack.c.bf16 %v67, %v67
    %v69 = vld [vmem:[#allocation5] sm:$0xf]
    %v70 = vld [vmem:[#allocation5 + $0x4] sm:$0xf]
    %v71 = vld [vmem:[#allocation5 + $0x8] sm:$0xf]
    %v72 = vld [vmem:[#allocation5 + $0xc] sm:$0xf]
    %v73 = vld [vmem:[%s2] sm:$0x1]
    %v75 = vperm.slane %v73, 0
    %v81 = vunpack.c.l.b16 %v69
    %v82 = vunpack.c.l.b16 %v70
    %v83 = vunpack.c.l.b16 %v71
    %v84 = vunpack.c.l.b16 %v72
    %v85 = vpack.c.b16 %v82, %v81
    %v86 = vpack.c.b16 %v84, %v83
    %vm89 = vcmask 261120
    %v91 = vsel %vm89, %v68, 0
    %93 = vmatpush.bf16.msra.mxu0 0
    %94 = vmatpush.bf16.msra.mxu0 0
    %95 = vmatpush.bf16.msra.mxu0 0
    %96 = vmatpush.bf16.msra.mxu0 0
    %97 = vmatpush.bf16.msra.mxu0 0
    %98 = vmatpush.bf16.msra.mxu0 0
    %99 = vmatpush.bf16.msra.mxu0 %v86
    %100 = vmatpush.bf16.msra.mxu0 %v85
    %101 = vmatmul.bf16.gmra.mxu0 %v91
    %v102 = vpop.f32.mrf.mxu0
    %v103 = vadd.f32 %v75, %v102
    %v104 = vpop.f32.mrf.mxu0
    %105 = vdwg.mxu0
    %v106 = vxor.u32 %v103, 2147483648
    %v107 = vmul.f32 %v106, 1.442695
    %v108 = vpow.pop %v107
    %v109 = vadd.f32 %v108, 1.0
    %v110 = vrcp.pop %v109
    %v111 = vmul.f32 %v109, %v110
    %v112 = vsub.f32 1.0, %v111
    %v113 = vmul.f32 %v110, %v112
    %v114 = vadd.f32 %v110, %v113
    %vm115 = vweird.f32 %v109
    %vm116 = vweird.f32 %v110
    %vm117 = vmor %vm115, %vm116
    %v118 = vsel %vm117, %v110, %v114
    %v119 = vand.u32 2147483647, %v109
    %vm120 = vcmp.eq.f32.partialorder %v119, 8.507059e+37
    %v121 = vand.u32 %v109, 2147483648
    %v122 = vor.u32 1.1754944e-38, %v121
    %v123 = vsel %vm120, %v122, %v118
    %v124 = vmul.f32 1.0, %v123
    %v125 = vmul.f32 %v103, %v124
    %v126 = vpack.c.bf16 %v125, %v125
    %v127 = vld [vmem:[#allocation7] sm:$0xf]
    %v128 = vld [vmem:[#allocation7 + $0x4] sm:$0xf]
    %v129 = vld [vmem:[#allocation7 + $0x8] sm:$0xf]
    %v130 = vld [vmem:[#allocation7 + $0xc] sm:$0xf]
    %v131 = vld [vmem:[#allocation7 + $0x10] sm:$0xf]
    %v132 = vld [vmem:[#allocation7 + $0x14] sm:$0xf]
    %v133 = vld [vmem:[#allocation7 + $0x18] sm:$0xf]
    %v134 = vld [vmem:[#allocation7 + $0x1c] sm:$0xf]
    %v135 = vld [vmem:[#allocation7 + $0x20] sm:$0xf]
    %v136 = vld [vmem:[#allocation7 + $0x24] sm:$0xf]
    %v137 = vld [vmem:[#allocation7 + $0x28] sm:$0xf]
    %v138 = vld [vmem:[#allocation7 + $0x2c] sm:$0xf]
    %v139 = vld [vmem:[#allocation7 + $0x30] sm:$0xf]
    %v140 = vld [vmem:[#allocation7 + $0x34] sm:$0xf]
    %v141 = vld [vmem:[#allocation7 + $0x38] sm:$0xf]
    %v142 = vld [vmem:[#allocation7 + $0x3c] sm:$0xf]
    %v143 = vld [vmem:[%s4] sm:$0x1]
    %v145 = vperm.slane %v143, 0
    %v163 = vunpack.c.l.b16 %v127
    %v164 = vunpack.c.l.b16 %v128
    %v165 = vunpack.c.l.b16 %v129
    %v166 = vunpack.c.l.b16 %v130
    %v167 = vunpack.c.l.b16 %v131
    %v168 = vunpack.c.l.b16 %v132
    %v169 = vunpack.c.l.b16 %v133
    %v170 = vunpack.c.l.b16 %v134
    %v171 = vunpack.c.l.b16 %v135
    %v172 = vunpack.c.l.b16 %v136
    %v173 = vunpack.c.l.b16 %v137
    %v174 = vunpack.c.l.b16 %v138
    %v175 = vunpack.c.l.b16 %v139
    %v176 = vunpack.c.l.b16 %v140
    %v177 = vunpack.c.l.b16 %v141
    %v178 = vunpack.c.l.b16 %v142
    %v179 = vpack.c.b16 %v164, %v163
    %v180 = vpack.c.b16 %v166, %v165
    %v181 = vpack.c.b16 %v168, %v167
    %v182 = vpack.c.b16 %v170, %v169
    %v183 = vpack.c.b16 %v172, %v171
    %v184 = vpack.c.b16 %v174, %v173
    %v185 = vpack.c.b16 %v176, %v175
    %v186 = vpack.c.b16 %v178, %v177
    %195 = vmatpush.bf16.msra.mxu0 %v186
    %196 = vmatpush.bf16.msra.mxu0 %v185
    %197 = vmatpush.bf16.msra.mxu0 %v184
    %198 = vmatpush.bf16.msra.mxu0 %v183
    %199 = vmatpush.bf16.msra.mxu0 %v182
    %200 = vmatpush.bf16.msra.mxu0 %v181
    %201 = vmatpush.bf16.msra.mxu0 %v180
    %202 = vmatpush.bf16.msra.mxu0 %v179
    %203 = vmatmul.bf16.gmra.mxu0 %v126
    %v204 = vpop.f32.mrf.mxu0
    %v205 = vadd.f32 %v145, %v204
    %v206 = vpop.f32.mrf.mxu0
    %207 = vdwg.mxu0
    %208 = vst [vmem:[#allocation8] sm:$0x3] %v205
    // Predicated region
    $region34: #{tpu_custom_call.1} parent=1 // pred_check
      _
    $region35: #{tpu_custom_call.1} parent=1 // pred_check_branch
      %210 = sbr.rel (0) target = $region37
    $region36: #{tpu_custom_call.1} parent=1 // pred_region
      %212 = vsyncadd [#allocation4], 0
      %s214 = sshll.u32 [#allocation8], 4
      %s215 = int_to_ptr.vmem [resolvable:$true] %s214
      %s216 = sshll.u32 %s5, 4
      %s217 = int_to_ptr.hbm [resolvable:$true] %s216
      %219 = dma.vmem_to_hbm [thread:$0]  %s215, 32, %s217, [#allocation4]
    $region37: #{tpu_custom_call.1} parent=1 // pred_fallthru
      _
    // Predicated region
    $region38: #{tpu_custom_call.1} parent=1 // pred_check
      _
    $region39: #{tpu_custom_call.1} parent=1 // pred_check_branch
      %221 = sbr.rel (0) target = $region41
    $region40: #{tpu_custom_call.1} parent=1 // pred_region
      %223 = dma.done [#allocation4], 32
    $region41: #{tpu_custom_call.1} parent=1 // pred_fallthru
      _
    %224 = vsyncpa [#allocation3], 1
    %225 = vsyncpa [#allocation6], 1
    %226 = vsyncpa [#allocation4], 1

</llo_original>
